<compile_context>
chip_gen: v5e
topology: v5e:2x2
jax: 0.10.0
libtpu: 0.0.40
codegen_flags: <defaults>
</compile_context>

<pallas_src>
import jax
import jax.numpy as jnp
from jax.experimental import pallas as pl
from jax.experimental.pallas import tpu as pltpu


_LANES = 128
_SUBLANES = 8
_TARGET_TILE_BYTES = 4 * 1024 * 1024   # ~4 MiB of x per grid step
_VMEM_LIMIT_BYTES = 32 * 1024 * 1024   # > v5e 16 MiB default; safe on v6e/v7x
_MIN_GRID_STEPS = 4                    # >= 2 steps per TensorCore on v7x


def _round_up(n: int, m: int) -> int:
    return ((n + m - 1) // m) * m


def _pick_tile_rows(rows: int, row_bytes: int) -> int:
    """Batch-tile rows sized by bytes (~_TARGET_TILE_BYTES), multiple of 8."""
    if rows <= _SUBLANES:
        return rows  # tiny problem: one block equal to the full array dim
    tb = max(_SUBLANES, (_TARGET_TILE_BYTES // row_bytes) // _SUBLANES * _SUBLANES)
    tb = min(tb, _round_up(rows, _SUBLANES))
    # Keep at least _MIN_GRID_STEPS grid steps when there is enough work so
    # the "parallel" batch axis actually shards across both TCs on v7x.
    if rows >= _MIN_GRID_STEPS * _SUBLANES:
        tb = min(tb, max(_SUBLANES, _round_up(pl.cdiv(rows, _MIN_GRID_STEPS), _SUBLANES)))
    return tb


# ---------------------------------------------------------------------------
# Kernels
# ---------------------------------------------------------------------------

def _logreg_kernel(x_ref, w_ref, b_ref, o_ref):
    # General path (in_features >= 128 or unpackable).
    # x_ref: (TB, I) VMEM   w_ref: (1, I) VMEM (grid-invariant, resident)
    # b_ref: (1, 1) SMEM    o_ref: (TB, 1) VMEM
    x = x_ref[...].astype(jnp.float32)
    w = w_ref[...].astype(jnp.float32)
    b = b_ref[0, 0]
    # out_features == 1: VPU multiply + XLU lane reduce (no N=1 MXU matmul,
    # no materialized w.T).
    z = jnp.sum(x * w, axis=-1, keepdims=True) + b          # (TB, 1) f32
    o_ref[...] = jax.nn.sigmoid(z).astype(o_ref.dtype)


def _logreg_packed_kernel(xp_ref, wbd_ref, b_ref, o_ref):
    # Packed path (in_features < 128, 128 % I == 0): P samples per 128-lane row.
    # xp_ref:  (TBp, P*I) VMEM  (P*I == 128, fully lane-dense)
    # wbd_ref: (P*I, P)   VMEM  block-diagonal weight (grid-invariant)
    # b_ref:   (1, 1)     SMEM
    # o_ref:   (TBp, P)   VMEM  (P logits per packed row)
    xp = xp_ref[...].astype(jnp.float32)
    wbd = wbd_ref[...].astype(jnp.float32)
    b = b_ref[0, 0]
    z = jnp.dot(xp, wbd, preferred_element_type=jnp.float32) + b   # (TBp, P)
    o_ref[...] = jax.nn.sigmoid(z).astype(o_ref.dtype)


# ---------------------------------------------------------------------------
# Wrapper
# ---------------------------------------------------------------------------

def _general_call(x, weight2d, bias2d, batch, in_features):
    # Lane padding: a (tb, I) f32 tile occupies max(I, 128) lanes per row.
    row_bytes = max(in_features, _LANES) * 4
    tb = _pick_tile_rows(batch, row_bytes)
    grid = (pl.cdiv(batch, tb),)                       # ragged last block: no pad
    return pl.pallas_call(
        _logreg_kernel,
        out_shape=jax.ShapeDtypeStruct((batch, 1), jnp.float32),
        grid=grid,
        in_specs=[
            # x: streamed batch tiles, auto double-buffered.
            pl.BlockSpec((tb, in_features), lambda i: (i, 0)),
            # weight: same block every step -> DMA'd once, stays in VMEM.
            pl.BlockSpec((1, in_features), lambda i: (0, 0)),
            # bias: scalar in SMEM.
            pl.BlockSpec(memory_space=pltpu.MemorySpace.SMEM),
        ],
        out_specs=pl.BlockSpec((tb, 1), lambda i: (i, 0)),
        compiler_params=pltpu.CompilerParams(
            dimension_semantics=("parallel",),
            vmem_limit_bytes=_VMEM_LIMIT_BYTES,
        ),
        cost_estimate=pl.CostEstimate(
            flops=2 * batch * in_features,
            transcendentals=batch,
            bytes_accessed=4 * (batch * in_features + in_features + 1 + batch),
        ),
    )(x, weight2d, bias2d)


def _packed_call(x, weight2d, bias2d, batch, in_features, pack):
    rows = batch // pack
    width = pack * in_features                         # == 128 lanes, fully dense
    # Row-major reshape is free (bitcast-style): `pack` consecutive samples
    # share one 128-lane row -> no 128/I lane-padding waste in VMEM or VPU.
    xp = x.reshape(rows, width)
    # Block-diagonal weight (width, pack): column c holds w at rows c*I:(c+1)*I,
    # so one small MXU matmul yields `pack` logits per packed row.
    w = weight2d.reshape(in_features).astype(jnp.float32)
    eye = jnp.eye(pack, dtype=jnp.float32)
    w_bd = (eye[:, None, :] * w[None, :, None]).reshape(width, pack)

    tb = _pick_tile_rows(rows, width * 4)
    grid = (pl.cdiv(rows, tb),)                        # ragged last block: no pad
    out = pl.pallas_call(
        _logreg_packed_kernel,
        out_shape=jax.ShapeDtypeStruct((rows, pack), jnp.float32),
        grid=grid,
        in_specs=[
            pl.BlockSpec((tb, width), lambda i: (i, 0)),
            pl.BlockSpec((width, pack), lambda i: (0, 0)),   # resident in VMEM
            pl.BlockSpec(memory_space=pltpu.MemorySpace.SMEM),
        ],
        out_specs=pl.BlockSpec((tb, pack), lambda i: (i, 0)),
        compiler_params=pltpu.CompilerParams(
            dimension_semantics=("parallel",),
            vmem_limit_bytes=_VMEM_LIMIT_BYTES,
        ),
        cost_estimate=pl.CostEstimate(
            flops=2 * batch * in_features,
            transcendentals=batch,
            bytes_accessed=4 * (batch * in_features + width * pack + 1 + batch),
        ),
    )(xp, w_bd, bias2d)
    # (rows, pack) row-major == (batch, 1): free reshape back.
    return out.reshape(batch, 1)


def logistic_regression(x, weight, bias):
    """sigmoid(x @ weight.T + bias) == nn.Sequential(nn.Linear(i,1), nn.Sigmoid())(x).

    Args:
      x:      (batch, in_features) or (in_features,) float32
      weight: (1, in_features) float32 (PyTorch nn.Linear layout)
      bias:   (1,) float32
    Returns:
      (batch, 1) float32, or (1,) for a 1-D input (matching the torch module).
    """
    single = x.ndim == 1
    if single:
        x = x[None, :]
    batch, in_features = x.shape
    weight2d = jnp.asarray(weight, jnp.float32).reshape(1, in_features)
    bias2d = jnp.asarray(bias, jnp.float32).reshape(1, 1)

    pack = _LANES // in_features if (in_features < _LANES and _LANES % in_features == 0) else 0
    if pack > 1 and batch % pack == 0:
        out = _packed_call(x, weight2d, bias2d, batch, in_features, pack)
    else:
        out = _general_call(x, weight2d, bias2d, batch, in_features)
    return out[0] if single else out


if __name__ == "__main__":
    in_features = 16   # mirrors `x = torch.rand(16)` in the reference file
    batch = 8          # small batch for the smoke test (packed MXU path)

    key = jax.random.PRNGKey(0)
    kx, kw, kb, kmore = jax.random.split(key, 4)

    # PyTorch nn.Linear-style uniform init bound.
    bound = 1.0 / float(in_features) ** 0.5
    weight = jax.random.uniform(kw, (1, in_features), jnp.float32, -bound, bound)
    bias = jax.random.uniform(kb, (1,), jnp.float32, -bound, bound)
    x = jax.random.uniform(kx, (batch, in_features), dtype=jnp.float32)

    out = jax.block_until_ready(logistic_regression(x, weight, bias))
    ref = jax.nn.sigmoid(x @ weight.T + bias)
    assert out.shape == (batch, 1)
    assert jnp.allclose(out, ref, atol=1e-5, rtol=1e-5)

    # Also exercise the general VPU+XLU path with a ragged last block.
    kw2, kb2, kx2 = jax.random.split(kmore, 3)
    in2, b2 = 256, 13
    bound2 = 1.0 / float(in2) ** 0.5
    w2 = jax.random.uniform(kw2, (1, in2), jnp.float32, -bound2, bound2)
    bb2 = jax.random.uniform(kb2, (1,), jnp.float32, -bound2, bound2)
    x2 = jax.random.uniform(kx2, (b2, in2), dtype=jnp.float32)
    out2 = jax.block_until_ready(logistic_regression(x2, w2, bb2))
    ref2 = jax.nn.sigmoid(x2 @ w2.T + bb2)
    assert out2.shape == (b2, 1)
    assert jnp.allclose(out2, ref2, atol=1e-5, rtol=1e-5)

    # 1-D input, exactly like the module's `forward(torch.rand(16))`.
    x1 = jax.random.uniform(kx, (in_features,), dtype=jnp.float32)
    out1 = jax.block_until_ready(logistic_regression(x1, weight, bias))
    ref1 = jax.nn.sigmoid(x1 @ weight.T + bias)
    assert out1.shape == (1,)
    assert jnp.allclose(out1, ref1, atol=1e-5, rtol=1e-5)

    print("KERNEL_OK")
</pallas_src>

<mosaic_0001>
module attributes {stable_mosaic.version = 11 : i64} {
  func.func @_logreg_packed_kernel(%arg0: i32, %arg1: memref<1x128xf32, #tpu.memory_space<vmem>>, %arg2: memref<128x8xf32, #tpu.memory_space<vmem>>, %arg3: memref<1x1xf32, #tpu.memory_space<smem>>, %arg4: memref<1x8xf32, #tpu.memory_space<vmem>>) attributes {dimension_semantics = [#tpu.dimension_semantics<parallel>], iteration_bounds = array<i64: 1>, scalar_prefetch = 0 : i64, scratch_operands = 0 : i64, tpu.core_type = #tpu.core_type<tc>, window_params = [{transform_indices = @transform_0, window_bounds = array<i64: 1, 128>}, {pipeline_mode = #tpu.pipeline_mode<synchronous>, transform_indices = @transform_1, window_bounds = array<i64: 128, 8>}, {transform_indices = @transform_2, window_bounds = array<i64: 1, 1>}, {transform_indices = @transform_3, window_bounds = array<i64: 1, 8>}]} {
    %c0 = arith.constant 0 : index
    %c0_0 = arith.constant 0 : index
    %0 = vector.load %arg1[%c0, %c0_0] : memref<1x128xf32, #tpu.memory_space<vmem>>, vector<1x128xf32>
    %c0_1 = arith.constant 0 : index
    %c0_2 = arith.constant 0 : index
    %1 = vector.load %arg2[%c0_1, %c0_2] : memref<128x8xf32, #tpu.memory_space<vmem>>, vector<128x8xf32>
    %c0_3 = arith.constant 0 : index
    %c0_4 = arith.constant 0 : index
    %2 = memref.load %arg3[%c0_3, %c0_4] : memref<1x1xf32, #tpu.memory_space<smem>>
    %cst = arith.constant dense<0.000000e+00> : vector<1x8xf32>
    %3 = tpu.matmul %0, %1, %cst {dimension_numbers = #tpu.dot_dimension_numbers<[1], [0], [0], [1], [0, 0, 1, 1], [], []>} : vector<1x128xf32>, vector<128x8xf32>, vector<1x8xf32> -> vector<1x8xf32>
    %4 = vector.broadcast %2 : f32 to vector<1x8xf32>
    %5 = arith.addf %3, %4 : vector<1x8xf32>
    %6 = arith.negf %5 : vector<1x8xf32>
    %7 = math.exp %6 : vector<1x8xf32>
    %cst_5 = arith.constant 1.000000e+00 : f32
    %8 = vector.broadcast %cst_5 : f32 to vector<1x8xf32>
    %9 = arith.addf %8, %7 : vector<1x8xf32>
    %10 = arith.divf %8, %9 : vector<1x8xf32>
    %c0_6 = arith.constant 0 : index
    %c0_7 = arith.constant 0 : index
    %11 = vector.load %arg4[%c0_6, %c0_7] : memref<1x8xf32, #tpu.memory_space<vmem>>, vector<1x8xf32>
    tpu.vector_store %arg4[%c0_6, %c0_7], %10 {strides = array<i32>} : memref<1x8xf32, #tpu.memory_space<vmem>>, vector<1x8xf32>,
    return
  }
  func.func @transform_0(%arg0: i32) -> (i32, i32) {
    %c0_i32 = arith.constant 0 : i32
    %c0_i32_0 = arith.constant 0 : i32
    return %arg0, %c0_i32 : i32, i32
  }
  func.func @transform_1(%arg0: i32) -> (i32, i32) {
    %c0_i32 = arith.constant 0 : i32
    %c0_i32_0 = arith.constant 0 : i32
    %c0_i32_1 = arith.constant 0 : i32
    return %c0_i32, %c0_i32_0 : i32, i32
  }
  func.func @transform_2(%arg0: i32) -> (i32, i32) {
    %c0_i32 = arith.constant 0 : i32
    %c0_i32_0 = arith.constant 0 : i32
    %c0_i32_1 = arith.constant 0 : i32
    return %c0_i32, %c0_i32_0 : i32, i32
  }
  func.func @transform_3(%arg0: i32) -> (i32, i32) {
    %c0_i32 = arith.constant 0 : i32
    %c0_i32_0 = arith.constant 0 : i32
    return %arg0, %c0_i32 : i32, i32
  }
}

</mosaic_0001>

<llo_original>
// kernel: tpu_custom_call.1
$region0: #{tpu_custom_call.1}
  #allocation0 [shape = 'u32[]', space=smem, size = 0x4, offset = 0x4, fixed_abs, tag = 'smem constant byte address 0x4 - core index']
  #allocation1 [shape = 'u32[72,128]{1,0:T(1,128)}', space=vmem, size = 0x9000, scoped, tag = 'internal scratch']
  #allocation2 [shape = 'f32[1,1]{1,0:T(1,128)S(6)}', space=smem, size = 0x200, scoped, tag = 'scoped memory for tpu_custom_call.1']
  %s0 = inlined_call_operand.vmem [shape: f32[1,128], index: 0, kind: input, shape index: {}]
  %s1 = inlined_call_operand.vmem [shape: f32[128,8], index: 1, kind: input, shape index: {}]
  %s2 = inlined_call_operand.<no memory space> [shape: f32[1,1], index: 2, kind: input, shape index: {}]
  %s3 = inlined_call_operand.hbm [shape: f32[1,8], index: 3, kind: output, shape index: {}]
  %s4 = sld [smem:[#allocation0]]
  $region22: #{tpu_custom_call.1} parent=0
    _
  %s6 = ssub.s32 1, %s4
  %s7 = scalar_select 0, %s6, %s4
  %8 = sst [smem:[#allocation2]] %s2
  $region1: #{tpu_custom_call.1} parent=0
    #allocation3 [shape = 'u8[512]{0}', space=vmem, size = 0x400, scoped, tag = 'output window, operand 0, single buffered']
    #allocation4 [shape = 's32[1]{0}', space=sflag, size = 0x4, scoped, tag = 'scoped memory for tpu_custom_call.1']
    %9 = vsyncpa [#allocation4], 0
    // Predicated region
    $region2: #{tpu_custom_call.1} parent=1 // pred_check
      _
    $region3: #{tpu_custom_call.1} parent=1 // pred_check_branch
      %11 = sbr.rel (0) target = $region5
    $region4: #{tpu_custom_call.1} parent=1 // pred_region
      _
    $region5: #{tpu_custom_call.1} parent=1 // pred_fallthru
      _
    // Predicated region
    $region6: #{tpu_custom_call.1} parent=1 // pred_check
      _
    $region7: #{tpu_custom_call.1} parent=1 // pred_check_branch
      %13 = sbr.rel (0) target = $region9
    $region8: #{tpu_custom_call.1} parent=1 // pred_region
      _
    $region9: #{tpu_custom_call.1} parent=1 // pred_fallthru
      _
    // Predicated region
    $region10: #{tpu_custom_call.1} parent=1 // pred_check
      _
    $region11: #{tpu_custom_call.1} parent=1 // pred_check_branch
      %15 = sbr.rel (0) target = $region13
    $region12: #{tpu_custom_call.1} parent=1 // pred_region
      _
    $region13: #{tpu_custom_call.1} parent=1 // pred_fallthru
      _
    %v16 = vld [vmem:[%s0] sm:$0x1]
    %v17 = vld [vmem:[%s1] sm:$0xff]
    %v18 = vld [vmem:[%s1 + $0x8] sm:$0xff]
    %v19 = vld [vmem:[%s1 + $0x10] sm:$0xff]
    %v20 = vld [vmem:[%s1 + $0x18] sm:$0xff]
    %v21 = vld [vmem:[%s1 + $0x20] sm:$0xff]
    %v22 = vld [vmem:[%s1 + $0x28] sm:$0xff]
    %v23 = vld [vmem:[%s1 + $0x30] sm:$0xff]
    %v24 = vld [vmem:[%s1 + $0x38] sm:$0xff]
    %v25 = vld [vmem:[%s1 + $0x40] sm:$0xff]
    %v26 = vld [vmem:[%s1 + $0x48] sm:$0xff]
    %v27 = vld [vmem:[%s1 + $0x50] sm:$0xff]
    %v28 = vld [vmem:[%s1 + $0x58] sm:$0xff]
    %v29 = vld [vmem:[%s1 + $0x60] sm:$0xff]
    %v30 = vld [vmem:[%s1 + $0x68] sm:$0xff]
    %v31 = vld [vmem:[%s1 + $0x70] sm:$0xff]
    %v32 = vld [vmem:[%s1 + $0x78] sm:$0xff]
    %s33 = sld [smem:[#allocation2]]
    %v34 = vstv %s33
    %35 = vmatpush.msra.mxu0 %v32
    %36 = vmatpush.msra.mxu0 %v31
    %37 = vmatpush.msra.mxu0 %v30
    %38 = vmatpush.msra.mxu0 %v29
    %39 = vmatpush.msra.mxu0 %v28
    %40 = vmatpush.msra.mxu0 %v27
    %41 = vmatpush.msra.mxu0 %v26
    %42 = vmatpush.msra.mxu0 %v25
    %43 = vmatpush.msra.mxu0 %v24
    %44 = vmatpush.msra.mxu0 %v23
    %45 = vmatpush.msra.mxu0 %v22
    %46 = vmatpush.msra.mxu0 %v21
    %47 = vmatpush.msra.mxu0 %v20
    %48 = vmatpush.msra.mxu0 %v19
    %49 = vmatpush.msra.mxu0 %v18
    %50 = vmatpush.msra.mxu0 %v17
    %51 = vmatmul.f32.gmra.mxu0 %v16
    %v52 = vpop.f32.mrf.mxu0
    %v53 = vadd.f32 %v34, %v52
    %54 = vdwg.mxu0
    %v55 = vxor.u32 %v53, 2147483648
    %v56 = vmul.f32 %v55, 1.442695
    %v57 = vpow.pop %v56
    %v58 = vadd.f32 %v57, 1.0
    %v59 = vrcp.pop %v58
    %v60 = vmul.f32 %v58, %v59
    %v61 = vsub.f32 1.0, %v60
    %v62 = vmul.f32 %v59, %v61
    %v63 = vadd.f32 %v59, %v62
    %vm64 = vweird.f32 %v58
    %vm65 = vweird.f32 %v59
    %vm66 = vmor %vm64, %vm65
    %v67 = vsel %vm66, %v59, %v63
    %v68 = vand.u32 2147483647, %v58
    %vm69 = vcmp.eq.f32.partialorder %v68, 8.507059e+37
    %v70 = vand.u32 %v58, 2147483648
    %v71 = vor.u32 1.1754944e-38, %v70
    %v72 = vsel %vm69, %v71, %v67
    %v73 = vmul.f32 1.0, %v72
    %vm74 = vcmask 57344
    %75 = vst.msk [vmem:[#allocation3] sm:$0x1] %vm74, %v73
    // Predicated region
    $region14: #{tpu_custom_call.1} parent=1 // pred_check
      _
    $region15: #{tpu_custom_call.1} parent=1 // pred_check_branch
      %77 = sbr.rel (0) target = $region17
    $region16: #{tpu_custom_call.1} parent=1 // pred_region
      %79 = vsyncadd [#allocation4], 0
      %s81 = sshll.u32 [#allocation3], 4
      %s82 = int_to_ptr.vmem [resolvable:$true] %s81
      %s83 = sshll.u32 %s3, 4
      %s84 = int_to_ptr.hbm [resolvable:$true] %s83
      %86 = dma.vmem_to_hbm [thread:$0]  %s82, 16, %s84, [#allocation4]
    $region17: #{tpu_custom_call.1} parent=1 // pred_fallthru
      _
    // Predicated region
    $region18: #{tpu_custom_call.1} parent=1 // pred_check
      _
    $region19: #{tpu_custom_call.1} parent=1 // pred_check_branch
      %88 = sbr.rel (0) target = $region21
    $region20: #{tpu_custom_call.1} parent=1 // pred_region
      %90 = dma.done [#allocation4], 16
    $region21: #{tpu_custom_call.1} parent=1 // pred_fallthru
      _
    %91 = vsyncpa [#allocation4], 1

</llo_original>
